<compile_context>
chip_gen: v5e
topology: v5e:2x2
jax: 0.10.0
libtpu: 0.0.40
codegen_flags: <defaults>
</compile_context>

<pallas_src>
import functools
import math

import jax
import jax.numpy as jnp
from jax import lax
from jax.experimental import pallas as pl
from jax.experimental.pallas import tpu as pltpu

_LANE = 128
_SUB = 8

# ---- float32 acos (fdlibm acosf constants), mul/add/sqrt/approx-rcp/where only ----
_PIO2_HI = 1.5707962513e+00
_PIO2_LO = 7.5497894159e-08
_PS0 = 1.6666586697e-01
_PS1 = -4.2743422091e-02
_PS2 = -8.6563630030e-03
_QS1 = -7.0662963390e-01


def _acos_f32(x):
    """acos for x in [-1, 1], ~float32 accuracy.  One sqrt + one approx-rcp on the EUP."""
    small = jnp.abs(x) < 0.5
    neg = x < 0.0
    # Select the reduced argument first so the rational polynomial and the sqrt are
    # each evaluated once, then recombine branches with cheap VALU selects.
    z = jnp.where(small, x * x, jnp.where(neg, (1.0 + x) * 0.5, (1.0 - x) * 0.5))
    p = z * (_PS0 + z * (_PS1 + z * _PS2))
    # Denominator is in [0.82, 1] and r only enters as a <= 0.05 correction term, so
    # the approximate reciprocal (EUP vrcp) replaces a full-precision divide safely.
    r = p * pl.reciprocal(1.0 + z * _QS1, approx=True)
    s = jnp.sqrt(z)
    acos_small = _PIO2_HI - (x - (_PIO2_LO - x * r))
    big = 2.0 * (s + s * r)                        # branch for x >= 0.5
    acos_neg = 2.0 * (_PIO2_HI + _PIO2_LO) - big   # branch for x <= -0.5
    return jnp.where(small, acos_small, jnp.where(neg, acos_neg, big))


# ---------------------------------- kernel ----------------------------------
def _sam_kernel(p_ref, t_ref, o_ref, *, eps, tile_r, p_true, need_mask):
    j = pl.program_id(1)

    p = p_ref[...].astype(jnp.float32)          # (1, C, tile_r, 128)
    t = t_ref[...].astype(jnp.float32)

    dot = jnp.sum(p * t, axis=1)                # (1, tile_r, 128)  sublane-dense
    pp = jnp.sum(p * p, axis=1)
    tt = jnp.sum(t * t, axis=1)
    denom = jnp.sqrt(pp * tt) + eps             # == ||p||*||t|| + eps, one sqrt
    cosang = jnp.clip(dot / denom, -1.0, 1.0)   # exact divide (acos ill-conditioned)
    theta = _acos_f32(cosang)                   # (1, tile_r, 128)

    def write(th):
        # Fold tile_r rows into one (8, 128) slab of partial sums (pure VALU vreg
        # adds) so the per-step output store is a single vreg slab.
        o_ref[...] = th.reshape(tile_r // _SUB, _SUB, _LANE).sum(axis=0)[None, None]

    if need_mask:
        last = pl.num_programs(1) - 1

        @pl.when(j == last)
        def _():
            # Padding only ever lives in the last pixel tile.
            row = lax.broadcasted_iota(jnp.int32, theta.shape, 1)
            lane = lax.broadcasted_iota(jnp.int32, theta.shape, 2)
            pix = (j * tile_r + row) * _LANE + lane
            write(jnp.where(pix < p_true, theta, 0.0))  # padded pixels contribute 0

        @pl.when(j != last)
        def _():
            write(theta)
    else:
        write(theta)


# --------------------------------- wrapper ----------------------------------
def sam_loss(prediction, target, unit_mode="rad", eps=1e-7):
    """Pallas SAMLoss forward. prediction/target: NCHW arrays, returns scalar f32."""
    N, C, H, W = prediction.shape
    assert target.shape == prediction.shape
    P = H * W
    itemsize = jnp.dtype(prediction.dtype).itemsize

    # ---- generation-aware VMEM budget (v5e/v6e: 128 MiB physical, v7x: 64 MiB) ----
    try:
        phys_vmem = int(pltpu.get_tpu_info().vmem_capacity_bytes)
    except Exception:  # interpret mode / older runtimes
        phys_vmem = 64 * 1024 * 1024
    vmem_limit = int(min(64 * 1024 * 1024, (phys_vmem * 3) // 4))

    # ---- tiling: rows of 128 pixels, tile_r rows per grid step ---------------------
    # Target ~2 MiB per input block (streaming gains flatten past that) while keeping
    # 2 inputs x 2 double-buffers + f32 temporaries comfortably inside vmem_limit.
    row_bytes = C * _LANE * itemsize
    block_bytes = min(2 * 1024 * 1024, vmem_limit // 16)
    tile_r = max(_SUB, (block_bytes // row_bytes) // _SUB * _SUB)

    R = pl.cdiv(P, _LANE)                       # pixel rows of 128
    if R <= tile_r:
        tile_r = pl.cdiv(R, _SUB) * _SUB        # single tile, rounded to a full vreg
    num_j = pl.cdiv(R, tile_r)
    R_pad = num_j * tile_r
    P_pad = R_pad * _LANE
    need_mask = P_pad != P                      # padding is confined to the last tile

    # ---- layout: free reshape NCHW -> (N, C, R_pad, 128); pad only when ragged -----
    def prep(x):
        x = x.reshape(N, C, P)
        if need_mask:
            x = jnp.pad(x, ((0, 0), (0, 0), (0, P_pad - P)))
        return x.reshape(N, C, R_pad, _LANE)

    p4 = prep(prediction)
    t4 = prep(target)

    kernel = functools.partial(
        _sam_kernel, eps=float(eps), tile_r=tile_r, p_true=P, need_mask=need_mask
    )

    cost = pl.CostEstimate(
        flops=int(N * P * (6 * C + 30)),
        transcendentals=int(4 * N * P),
        bytes_accessed=int(2 * N * C * P_pad * itemsize + N * num_j * _SUB * _LANE * 4),
    )

    partials = pl.pallas_call(
        kernel,
        out_shape=jax.ShapeDtypeStruct((N, num_j, _SUB, _LANE), jnp.float32),
        grid_spec=pltpu.PrefetchScalarGridSpec(
            num_scalar_prefetch=0,
            grid=(N, num_j),
            in_specs=[
                pl.BlockSpec((1, C, tile_r, _LANE), lambda n, j: (n, 0, j, 0)),
                pl.BlockSpec((1, C, tile_r, _LANE), lambda n, j: (n, 0, j, 0)),
            ],
            out_specs=pl.BlockSpec((1, 1, _SUB, _LANE), lambda n, j: (n, j, 0, 0)),
        ),
        compiler_params=pltpu.CompilerParams(
            dimension_semantics=("parallel", "parallel"),
            vmem_limit_bytes=vmem_limit,
        ),
        cost_estimate=cost,
    )(p4, t4)

    loss = jnp.sum(partials) * (1.0 / (N * P))
    if unit_mode == "deg":
        loss = loss * (180.0 / math.pi)
    return loss


# --------------------------------- reference --------------------------------
def sam_loss_ref(prediction, target, unit_mode="rad", eps=1e-7):
    p = prediction.astype(jnp.float32)
    t = target.astype(jnp.float32)
    dot = jnp.sum(p * t, axis=1)
    denom = jnp.sqrt(jnp.sum(p * p, axis=1)) * jnp.sqrt(jnp.sum(t * t, axis=1)) + eps
    cos = jnp.clip(dot / denom, -1.0, 1.0)
    out = jnp.mean(jnp.arccos(cos))
    if unit_mode == "deg":
        out = out * (180.0 / math.pi)
    return out


if __name__ == "__main__":
    key = jax.random.PRNGKey(0)
    k1, k2 = jax.random.split(key)
    N, C, H, W = 2, 4, 16, 16
    pred = jax.random.normal(k1, (N, C, H, W), dtype=jnp.float32)
    targ = jax.random.normal(k2, (N, C, H, W), dtype=jnp.float32)

    loss_rad = jax.block_until_ready(sam_loss(pred, targ, unit_mode="rad"))
    loss_deg = jax.block_until_ready(sam_loss(pred, targ, unit_mode="deg"))

    ref_rad = sam_loss_ref(pred, targ, unit_mode="rad")
    ref_deg = sam_loss_ref(pred, targ, unit_mode="deg")

    assert abs(float(loss_rad) - float(ref_rad)) < 3e-4, (loss_rad, ref_rad)
    assert abs(float(loss_deg) - float(ref_deg)) < 2e-2, (loss_deg, ref_deg)

    print("KERNEL_OK")
</pallas_src>

<mosaic_0001>
module attributes {stable_mosaic.version = 11 : i64} {
  func.func @_sam_kernel(%arg0: i32, %arg1: i32, %arg2: memref<1x4x8x128xf32, #tpu.memory_space<vmem>>, %arg3: memref<1x4x8x128xf32, #tpu.memory_space<vmem>>, %arg4: memref<1x1x8x128xf32, #tpu.memory_space<vmem>>) attributes {dimension_semantics = [#tpu.dimension_semantics<parallel>, #tpu.dimension_semantics<parallel>], iteration_bounds = array<i64: 2, 1>, scalar_prefetch = 0 : i64, scratch_operands = 0 : i64, tpu.core_type = #tpu.core_type<tc>, window_params = [{transform_indices = @transform_0, window_bounds = array<i64: 1, 4, 8, 128>}, {transform_indices = @transform_1, window_bounds = array<i64: 1, 4, 8, 128>}, {transform_indices = @transform_2, window_bounds = array<i64: 1, 1, 8, 128>}]} {
    %c0 = arith.constant 0 : index
    %c0_0 = arith.constant 0 : index
    %c0_1 = arith.constant 0 : index
    %c0_2 = arith.constant 0 : index
    %0 = vector.load %arg2[%c0, %c0_0, %c0_1, %c0_2] : memref<1x4x8x128xf32, #tpu.memory_space<vmem>>, vector<1x4x8x128xf32>
    %c0_3 = arith.constant 0 : index
    %c0_4 = arith.constant 0 : index
    %c0_5 = arith.constant 0 : index
    %c0_6 = arith.constant 0 : index
    %1 = vector.load %arg3[%c0_3, %c0_4, %c0_5, %c0_6] : memref<1x4x8x128xf32, #tpu.memory_space<vmem>>, vector<1x4x8x128xf32>
    %2 = arith.mulf %0, %1 : vector<1x4x8x128xf32>
    %cst = arith.constant dense<0.000000e+00> : vector<1x8x128xf32>
    %3 = vector.multi_reduction <add>, %2, %cst [1] : vector<1x4x8x128xf32> to vector<1x8x128xf32>
    %4 = arith.mulf %0, %0 : vector<1x4x8x128xf32>
    %cst_7 = arith.constant dense<0.000000e+00> : vector<1x8x128xf32>
    %5 = vector.multi_reduction <add>, %4, %cst_7 [1] : vector<1x4x8x128xf32> to vector<1x8x128xf32>
    %6 = arith.mulf %1, %1 : vector<1x4x8x128xf32>
    %cst_8 = arith.constant dense<0.000000e+00> : vector<1x8x128xf32>
    %7 = vector.multi_reduction <add>, %6, %cst_8 [1] : vector<1x4x8x128xf32> to vector<1x8x128xf32>
    %8 = arith.mulf %5, %7 : vector<1x8x128xf32>
    %9 = math.sqrt %8 : vector<1x8x128xf32>
    %cst_9 = arith.constant 1.000000e-07 : f32
    %10 = vector.broadcast %cst_9 : f32 to vector<1x8x128xf32>
    %11 = arith.addf %9, %10 : vector<1x8x128xf32>
    %12 = arith.divf %3, %11 : vector<1x8x128xf32>
    %cst_10 = arith.constant -1.000000e+00 : f32
    %cst_11 = arith.constant 1.000000e+00 : f32
    %13 = vector.broadcast %cst_10 : f32 to vector<1x8x128xf32>
    %14 = arith.maximumf %13, %12 : vector<1x8x128xf32>
    %15 = vector.broadcast %cst_11 : f32 to vector<1x8x128xf32>
    %16 = arith.minimumf %15, %14 : vector<1x8x128xf32>
    %17 = math.absf %16 : vector<1x8x128xf32>
    %cst_12 = arith.constant 5.000000e-01 : f32
    %18 = vector.broadcast %cst_12 : f32 to vector<1x8x128xf32>
    %19 = arith.cmpf olt, %17, %18 : vector<1x8x128xf32>
    %cst_13 = arith.constant 0.000000e+00 : f32
    %20 = vector.broadcast %cst_13 : f32 to vector<1x8x128xf32>
    %21 = arith.cmpf olt, %16, %20 : vector<1x8x128xf32>
    %22 = arith.mulf %16, %16 : vector<1x8x128xf32>
    %cst_14 = arith.constant 1.000000e+00 : f32
    %23 = vector.broadcast %cst_14 : f32 to vector<1x8x128xf32>
    %24 = arith.addf %23, %16 : vector<1x8x128xf32>
    %cst_15 = arith.constant 5.000000e-01 : f32
    %25 = vector.broadcast %cst_15 : f32 to vector<1x8x128xf32>
    %26 = arith.mulf %24, %25 : vector<1x8x128xf32>
    %cst_16 = arith.constant 1.000000e+00 : f32
    %27 = vector.broadcast %cst_16 : f32 to vector<1x8x128xf32>
    %28 = arith.subf %27, %16 : vector<1x8x128xf32>
    %cst_17 = arith.constant 5.000000e-01 : f32
    %29 = vector.broadcast %cst_17 : f32 to vector<1x8x128xf32>
    %30 = arith.mulf %28, %29 : vector<1x8x128xf32>
    %31 = arith.select %21, %26, %30 : vector<1x8x128xi1>, vector<1x8x128xf32>
    %32 = arith.select %19, %22, %31 : vector<1x8x128xi1>, vector<1x8x128xf32>
    %cst_18 = arith.constant -0.008656363 : f32
    %33 = vector.broadcast %cst_18 : f32 to vector<1x8x128xf32>
    %34 = arith.mulf %32, %33 : vector<1x8x128xf32>
    %cst_19 = arith.constant -0.0427434221 : f32
    %35 = vector.broadcast %cst_19 : f32 to vector<1x8x128xf32>
    %36 = arith.addf %35, %34 : vector<1x8x128xf32>
    %37 = arith.mulf %32, %36 : vector<1x8x128xf32>
    %cst_20 = arith.constant 0.166665867 : f32
    %38 = vector.broadcast %cst_20 : f32 to vector<1x8x128xf32>
    %39 = arith.addf %38, %37 : vector<1x8x128xf32>
    %40 = arith.mulf %32, %39 : vector<1x8x128xf32>
    %cst_21 = arith.constant -0.706629634 : f32
    %41 = vector.broadcast %cst_21 : f32 to vector<1x8x128xf32>
    %42 = arith.mulf %32, %41 : vector<1x8x128xf32>
    %cst_22 = arith.constant 1.000000e+00 : f32
    %43 = vector.broadcast %cst_22 : f32 to vector<1x8x128xf32>
    %44 = arith.addf %43, %42 : vector<1x8x128xf32>
    %45 = tpu.reciprocal %44 {approx = true} : vector<1x8x128xf32> -> vector<1x8x128xf32>
    %46 = arith.mulf %40, %45 : vector<1x8x128xf32>
    %47 = math.sqrt %32 : vector<1x8x128xf32>
    %48 = arith.mulf %16, %46 : vector<1x8x128xf32>
    %cst_23 = arith.constant 7.54978942E-8 : f32
    %49 = vector.broadcast %cst_23 : f32 to vector<1x8x128xf32>
    %50 = arith.subf %49, %48 : vector<1x8x128xf32>
    %51 = arith.subf %16, %50 : vector<1x8x128xf32>
    %cst_24 = arith.constant 1.57079625 : f32
    %52 = vector.broadcast %cst_24 : f32 to vector<1x8x128xf32>
    %53 = arith.subf %52, %51 : vector<1x8x128xf32>
    %54 = arith.mulf %47, %46 : vector<1x8x128xf32>
    %55 = arith.addf %47, %54 : vector<1x8x128xf32>
    %cst_25 = arith.constant 2.000000e+00 : f32
    %56 = vector.broadcast %cst_25 : f32 to vector<1x8x128xf32>
    %57 = arith.mulf %56, %55 : vector<1x8x128xf32>
    %cst_26 = arith.constant 3.14159274 : f32
    %58 = vector.broadcast %cst_26 : f32 to vector<1x8x128xf32>
    %59 = arith.subf %58, %57 : vector<1x8x128xf32>
    %60 = arith.select %21, %59, %57 : vector<1x8x128xi1>, vector<1x8x128xf32>
    %61 = arith.select %19, %53, %60 : vector<1x8x128xi1>, vector<1x8x128xf32>
    %c0_i32 = arith.constant 0 : i32
    %62 = arith.cmpi eq, %arg1, %c0_i32 : i32
    %63 = arith.extui %62 : i1 to i32
    %c0_i32_27 = arith.constant 0 : i32
    %64 = arith.cmpi ne, %63, %c0_i32_27 : i32
    scf.if %64 {
      %68 = tpu.iota {dimensions = array<i32: 1>} : vector<1x8x128xi32>
      %69 = tpu.iota {dimensions = array<i32: 2>} : vector<1x8x128xi32>
      %c8_i32 = arith.constant 8 : i32
      %70 = arith.muli %arg1, %c8_i32 : i32
      %71 = vector.broadcast %70 : i32 to vector<1x8x128xi32>
      %72 = arith.addi %71, %68 : vector<1x8x128xi32>
      %c128_i32 = arith.constant 128 : i32
      %73 = vector.broadcast %c128_i32 : i32 to vector<1x8x128xi32>
      %74 = arith.muli %72, %73 : vector<1x8x128xi32>
      %75 = arith.addi %74, %69 : vector<1x8x128xi32>
      %c256_i32 = arith.constant 256 : i32
      %76 = vector.broadcast %c256_i32 : i32 to vector<1x8x128xi32>
      %77 = arith.cmpi slt, %75, %76 : vector<1x8x128xi32>
      %cst_30 = arith.constant 0.000000e+00 : f32
      %78 = vector.broadcast %cst_30 : f32 to vector<1x8x128xf32>
      %79 = arith.select %77, %61, %78 : vector<1x8x128xi1>, vector<1x8x128xf32>
      %cst_31 = arith.constant dense<0.000000e+00> : vector<8x128xf32>
      %80 = vector.multi_reduction <add>, %79, %cst_31 [0] : vector<1x8x128xf32> to vector<8x128xf32>
      %81 = vector.shape_cast %80 : vector<8x128xf32> to vector<1x1x8x128xf32>
      %c0_32 = arith.constant 0 : index
      %c0_33 = arith.constant 0 : index
      %c0_34 = arith.constant 0 : index
      %c0_35 = arith.constant 0 : index
      %82 = vector.load %arg4[%c0_32, %c0_33, %c0_34, %c0_35] : memref<1x1x8x128xf32, #tpu.memory_space<vmem>>, vector<1x1x8x128xf32>
      tpu.vector_store %arg4[%c0_32, %c0_33, %c0_34, %c0_35], %81 {strides = array<i32>} : memref<1x1x8x128xf32, #tpu.memory_space<vmem>>, vector<1x1x8x128xf32>,
    } else {
    }
    %c0_i32_28 = arith.constant 0 : i32
    %65 = arith.cmpi ne, %arg1, %c0_i32_28 : i32
    %66 = arith.extui %65 : i1 to i32
    %c0_i32_29 = arith.constant 0 : i32
    %67 = arith.cmpi ne, %66, %c0_i32_29 : i32
    scf.if %67 {
      %cst_30 = arith.constant dense<0.000000e+00> : vector<8x128xf32>
      %68 = vector.multi_reduction <add>, %61, %cst_30 [0] : vector<1x8x128xf32> to vector<8x128xf32>
      %69 = vector.shape_cast %68 : vector<8x128xf32> to vector<1x1x8x128xf32>
      %c0_31 = arith.constant 0 : index
      %c0_32 = arith.constant 0 : index
      %c0_33 = arith.constant 0 : index
      %c0_34 = arith.constant 0 : index
      %70 = vector.load %arg4[%c0_31, %c0_32, %c0_33, %c0_34] : memref<1x1x8x128xf32, #tpu.memory_space<vmem>>, vector<1x1x8x128xf32>
      tpu.vector_store %arg4[%c0_31, %c0_32, %c0_33, %c0_34], %69 {strides = array<i32>} : memref<1x1x8x128xf32, #tpu.memory_space<vmem>>, vector<1x1x8x128xf32>,
    } else {
    }
    return
  }
  func.func @transform_0(%arg0: i32, %arg1: i32) -> (i32, i32, i32, i32) {
    %c0_i32 = arith.constant 0 : i32
    %c0_i32_0 = arith.constant 0 : i32
    %c0_i32_1 = arith.constant 0 : i32
    return %arg0, %c0_i32, %arg1, %c0_i32_0 : i32, i32, i32, i32
  }
  func.func @transform_1(%arg0: i32, %arg1: i32) -> (i32, i32, i32, i32) {
    %c0_i32 = arith.constant 0 : i32
    %c0_i32_0 = arith.constant 0 : i32
    %c0_i32_1 = arith.constant 0 : i32
    return %arg0, %c0_i32, %arg1, %c0_i32_0 : i32, i32, i32, i32
  }
  func.func @transform_2(%arg0: i32, %arg1: i32) -> (i32, i32, i32, i32) {
    %c0_i32 = arith.constant 0 : i32
    %c0_i32_0 = arith.constant 0 : i32
    %c0_i32_1 = arith.constant 0 : i32
    return %arg0, %arg1, %c0_i32, %c0_i32_0 : i32, i32, i32, i32
  }
}

</mosaic_0001>

<llo_original>
// kernel: tpu_custom_call.1
$region0: #{tpu_custom_call.1}
  #allocation0 [shape = 'u32[]', space=smem, size = 0x4, offset = 0x4, fixed_abs, tag = 'smem constant byte address 0x4 - core index']
  #allocation1 [shape = 'u32[72,128]{1,0:T(1,128)}', space=vmem, size = 0x9000, scoped, tag = 'internal scratch']
  %s0 = inlined_call_operand.hbm [shape: f32[2,4,8,128], index: 0, kind: input, shape index: {}]
  %s1 = inlined_call_operand.hbm [shape: f32[2,4,8,128], index: 1, kind: input, shape index: {}]
  %s2 = inlined_call_operand.hbm [shape: f32[2,1,8,128], index: 2, kind: output, shape index: {}]
  %s3 = sld [smem:[#allocation0]]
  $region57: #{tpu_custom_call.1} parent=0
    _
  %s5 = ssub.s32 1, %s3
  %s6 = scalar_select 0, %s5, %s3
  $region1: #{tpu_custom_call.1} parent=0
    #allocation2 [shape = 'u8[32768]{0}', space=vmem, size = 0x8000, scoped, tag = 'input window, operand 0']
    #allocation3 [shape = 's32[2]{0}', space=sflag, size = 0x8, scoped, tag = 'scoped memory for tpu_custom_call.1']
    #allocation4 [shape = 's32[2]{0}', space=sflag, size = 0x8, scoped, tag = 'scoped memory for tpu_custom_call.1']
    #allocation5 [shape = 'u8[32768]{0}', space=vmem, size = 0x8000, scoped, tag = 'input window, operand 1']
    #allocation6 [shape = 's32[2]{0}', space=sflag, size = 0x8, scoped, tag = 'scoped memory for tpu_custom_call.1']
    #allocation7 [shape = 'u8[8192]{0}', space=vmem, size = 0x2000, scoped, tag = 'output window, operand 0']
    %7 = vsyncpa [#allocation3], 0
    %s8 = scalar_lea.sflag [#allocation3], 1
    %9 = vsyncpa %s8, 0
    %10 = vsyncpa [#allocation6], 0
    %s11 = scalar_lea.sflag [#allocation6], 1
    %12 = vsyncpa %s11, 0
    %13 = vsyncpa [#allocation4], 0
    %s14 = scalar_lea.sflag [#allocation4], 1
    %15 = vsyncpa %s14, 0
    loop: start=0, step=1, limit=4
    $region2: #{tpu_custom_call.1} parent=1 // loop_pre_header
      _
    $region3: #{tpu_custom_call.1} parent=1 // loop_header
      %s17 = sphi 0, %s21
      %p18 = scmp.ge.s32.totalorder %s17, 4
      %s24 = sphi 0, %s36
      %s25 = sphi 0, %s32
      %s26 = sphi 0, %s24
      %s27 = sphi 0, %s25
      %s28 = sphi 0, %s26
      %s29 = sphi 0, %s27
      %s41 = sphi 0, %s43
      %s44 = sphi 0, %s41
      %s45 = sphi 0, %s44
      %s61 = sphi 0, %s45
      %s69 = sphi 0, %s71
      %s72 = sphi 0, %s69
      %s73 = sphi 0, %s72
      %s89 = sphi 0, %s73
      %s97 = sphi 0, %s99
      %s100 = sphi 0, %s97
      %s101 = sphi 0, %s100
      %s117 = sphi 0, %s101
    $region4: #{tpu_custom_call.1} parent=1 // loop_header_branch
      %20 = sbr.rel (%p18) target = $region8
    $region5: #{tpu_custom_call.1} parent=1 // loop_body
      %s22 = ssub.s32 %s17, 1
      %s23 = ssub.s32 %s17, 2
      %s30 = sadd.s32 1, %s25
      %p31 = scmp.ge.s32.totalorder %s30, 1
      %s32 = scalar_select %p31, 0, %s30
      %s33 = sadd.s32 1, %s24
      %s34 = scalar_select %p31, %s33, %s24
      %p35 = scmp.ge.s32.totalorder %s34, 2
      %s36 = scalar_select %p35, 0, %s34
      %s37 = ssub.s32 %s24, %s36
      %s38 = ssub.s32 %s25, %s32
      %s39 = sor.u32 %s37, %s38
      %p40 = scmp.eq.s32.totalorder %s39, 0
      %s42 = sadd.s32 %s41, 1
      %s43 = scalar_select %p40, %s41, %s42
      %p46 = pneg %p40
      %p47 = scmp.eq.s32.totalorder %s17, 1
      %p48 = por %p46, %p47
      %p49 = scmp.ne.s32.totalorder %s41, %s44
      %p50 = scmp.eq.s32.totalorder %s17, 0
      %p51 = por %p49, %p50
      %p52 = scmp.ne.s32.totalorder %s41, %s44
      %p53 = scmp.eq.s32.totalorder %s22, 1
      %p54 = por %p52, %p53
      %p55 = scmp.ne.s32.totalorder %s44, %s45
      %p56 = scmp.eq.s32.totalorder %s22, 0
      %p57 = por %p55, %p56
      %p58 = scmp.ne.s32.totalorder %s44, %s45
      %p59 = scmp.eq.s32.totalorder %s23, 1
      %p60 = por %p58, %p59
      %p62 = scmp.ne.s32.totalorder %s45, %s61
      %p63 = scmp.eq.s32.totalorder %s23, 0
      %p64 = por %p62, %p63
      %s65 = ssub.s32 %s24, %s36
      %s66 = ssub.s32 %s25, %s32
      %s67 = sor.u32 %s65, %s66
      %p68 = scmp.eq.s32.totalorder %s67, 0
      %s70 = sadd.s32 %s69, 1
      %s71 = scalar_select %p68, %s69, %s70
      %p74 = pneg %p68
      %p75 = scmp.eq.s32.totalorder %s17, 1
      %p76 = por %p74, %p75
      %p77 = scmp.ne.s32.totalorder %s69, %s72
      %p78 = scmp.eq.s32.totalorder %s17, 0
      %p79 = por %p77, %p78
      %p80 = scmp.ne.s32.totalorder %s69, %s72
      %p81 = scmp.eq.s32.totalorder %s22, 1
      %p82 = por %p80, %p81
      %p83 = scmp.ne.s32.totalorder %s72, %s73
      %p84 = scmp.eq.s32.totalorder %s22, 0
      %p85 = por %p83, %p84
      %p86 = scmp.ne.s32.totalorder %s72, %s73
      %p87 = scmp.eq.s32.totalorder %s23, 1
      %p88 = por %p86, %p87
      %p90 = scmp.ne.s32.totalorder %s73, %s89
      %p91 = scmp.eq.s32.totalorder %s23, 0
      %p92 = por %p90, %p91
      %s93 = ssub.s32 %s24, %s36
      %s94 = ssub.s32 %s25, %s32
      %s95 = sor.u32 %s93, %s94
      %p96 = scmp.eq.s32.totalorder %s95, 0
      %s98 = sadd.s32 %s97, 1
      %s99 = scalar_select %p96, %s97, %s98
      %p102 = pneg %p96
      %p103 = scmp.eq.s32.totalorder %s17, 1
      %p104 = por %p102, %p103
      %p105 = scmp.ne.s32.totalorder %s97, %s100
      %p106 = scmp.eq.s32.totalorder %s17, 0
      %p107 = por %p105, %p106
      %p108 = scmp.ne.s32.totalorder %s97, %s100
      %p109 = scmp.eq.s32.totalorder %s22, 1
      %p110 = por %p108, %p109
      %p111 = scmp.ne.s32.totalorder %s100, %s101
      %p112 = scmp.eq.s32.totalorder %s22, 0
      %p113 = por %p111, %p112
      %p114 = scmp.ne.s32.totalorder %s100, %s101
      %p115 = scmp.eq.s32.totalorder %s23, 1
      %p116 = por %p114, %p115
      %p118 = scmp.ne.s32.totalorder %s101, %s117
      %p119 = scmp.eq.s32.totalorder %s23, 0
      %p120 = por %p118, %p119
      %p121 = scmp.le.s32.totalorder 1, %s17
      %p122 = scmp.lt.s32.totalorder %s17, 3
      %p123 = pnand %p121, %p122
      %p124 = pneg %p123
      // Predicated region
      $region9: #{tpu_custom_call.1} parent=5 // pred_check
        _
      $region10: #{tpu_custom_call.1} parent=5 // pred_check_branch
        %126 = sbr.rel (%p123) target = $region12
      $region11: #{tpu_custom_call.1} parent=5 // pred_region
        %s127 = ssub.s32 %s17, 1
      $region12: #{tpu_custom_call.1} parent=5 // pred_fallthru
        _
      %p128 = scmp.lt.s32.totalorder %s17, 2
      // Predicated region
      $region13: #{tpu_custom_call.1} parent=5 // pred_check
        %p129 = pneg %p128
      $region14: #{tpu_custom_call.1} parent=5 // pred_check_branch
        %131 = sbr.rel (%p129) target = $region16
      $region15: #{tpu_custom_call.1} parent=5 // pred_region
        // Predicated region
        $region17: #{tpu_custom_call.1} parent=15 // pred_check
          %p132 = pneg %p51
        $region18: #{tpu_custom_call.1} parent=15 // pred_check_branch
          %134 = sbr.rel (%p132) target = $region20
        $region19: #{tpu_custom_call.1} parent=15 // pred_region
          %s135 = sand.u32 %s41, 1
          %s136 = scalar_lea.sflag [#allocation3], %s135
          %s137 = sand.u32 %s41, 1
          %s138 = smul.addr %s137, 32
          %s139 = scalar_lea.vmem [#allocation2], %s138
          %141 = vsyncadd %s136, 0
          %s142 = smul.addr %s24, 4
          %s143 = sadd.s32 %s25, %s142
          %s144 = smul.addr %s143, 8
          %s145 = scalar_lea.hbm %s0, %s144
          %s146 = sshll.u32 %s145, 4
          %s147 = int_to_ptr.hbm [resolvable:$true] %s146
          %s148 = sshll.u32 %s139, 4
          %s149 = int_to_ptr.vmem [resolvable:$true] %s148
          %154 = dma.hbm_to_vmem [thread:$0]  %s147, 512, %s149, %s136, 128, 128, 8
        $region20: #{tpu_custom_call.1} parent=15 // pred_fallthru
          _
        // Predicated region
        $region21: #{tpu_custom_call.1} parent=15 // pred_check
          %p155 = pneg %p79
        $region22: #{tpu_custom_call.1} parent=15 // pred_check_branch
          %157 = sbr.rel (%p155) target = $region24
        $region23: #{tpu_custom_call.1} parent=15 // pred_region
          %s158 = sand.u32 %s69, 1
          %s159 = scalar_lea.sflag [#allocation6], %s158
          %s160 = sand.u32 %s69, 1
          %s161 = smul.addr %s160, 32
          %s162 = scalar_lea.vmem [#allocation5], %s161
          %164 = vsyncadd %s159, 0
          %s165 = smul.addr %s24, 4
          %s166 = sadd.s32 %s25, %s165
          %s167 = smul.addr %s166, 8
          %s168 = scalar_lea.hbm %s1, %s167
          %s169 = sshll.u32 %s168, 4
          %s170 = int_to_ptr.hbm [resolvable:$true] %s169
          %s171 = sshll.u32 %s162, 4
          %s172 = int_to_ptr.vmem [resolvable:$true] %s171
          %177 = dma.hbm_to_vmem [thread:$0]  %s170, 512, %s172, %s159, 128, 128, 8
        $region24: #{tpu_custom_call.1} parent=15 // pred_fallthru
          _
      $region16: #{tpu_custom_call.1} parent=5 // pred_fallthru
        _
      %p178 = scmp.le.s32.totalorder 1, %s17
      %p179 = scmp.lt.s32.totalorder %s17, 3
      %p180 = pnand %p178, %p179
      %p181 = pneg %p180
      // Predicated region
      $region25: #{tpu_custom_call.1} parent=5 // pred_check
        _
      $region26: #{tpu_custom_call.1} parent=5 // pred_check_branch
        %183 = sbr.rel (%p180) target = $region28
      $region27: #{tpu_custom_call.1} parent=5 // pred_region
        %s184 = ssub.s32 %s17, 1
        %s185 = sand.u32 %s44, 1
        %s186 = scalar_lea.sflag [#allocation3], %s185
        %s187 = sand.u32 %s44, 1
        %s188 = smul.addr %s187, 32
        %s189 = scalar_lea.vmem [#allocation2], %s188
        // Predicated region
        $region29: #{tpu_custom_call.1} parent=27 // pred_check
          %p190 = pneg %p57
        $region30: #{tpu_custom_call.1} parent=27 // pred_check_branch
          %192 = sbr.rel (%p190) target = $region32
        $region31: #{tpu_custom_call.1} parent=27 // pred_region
          %194 = dma.done %s186, 512
        $region32: #{tpu_custom_call.1} parent=27 // pred_fallthru
          _
        %s195 = sand.u32 %s72, 1
        %s196 = scalar_lea.sflag [#allocation6], %s195
        %s197 = sand.u32 %s72, 1
        %s198 = smul.addr %s197, 32
        %s199 = scalar_lea.vmem [#allocation5], %s198
        // Predicated region
        $region33: #{tpu_custom_call.1} parent=27 // pred_check
          %p200 = pneg %p85
        $region34: #{tpu_custom_call.1} parent=27 // pred_check_branch
          %202 = sbr.rel (%p200) target = $region36
        $region35: #{tpu_custom_call.1} parent=27 // pred_region
          %204 = dma.done %s196, 512
        $region36: #{tpu_custom_call.1} parent=27 // pred_fallthru
          _
        %s205 = sand.u32 %s44, 1
        %s206 = scalar_lea.sflag [#allocation3], %s205
        %s207 = sand.u32 %s44, 1
        %s208 = smul.addr %s207, 32
        %s209 = scalar_lea.vmem [#allocation2], %s208
        %p210 = pneg %p57
        %p211 = pneg %p54
        %s212 = sand.u32 %s72, 1
        %s213 = scalar_lea.sflag [#allocation6], %s212
        %s214 = sand.u32 %s72, 1
        %s215 = smul.addr %s214, 32
        %s216 = scalar_lea.vmem [#allocation5], %s215
        %p217 = pneg %p85
        %p218 = pneg %p82
        %p219 = pneg %p113
        %p220 = pneg %p110
        %s221 = sand.u32 %s100, 1
        %s222 = scalar_lea.sflag [#allocation4], %s221
        %s223 = sand.u32 %s100, 1
        %s224 = smul.addr %s223, 8
        %s225 = scalar_lea.vmem [#allocation7], %s224
        %v226 = vld [vmem:[%s189] sm:$0xff]
        %v227 = vld [vmem:[%s189 + $0x8] sm:$0xff]
        %v228 = vld [vmem:[%s189 + $0x10] sm:$0xff]
        %v229 = vld [vmem:[%s189 + $0x18] sm:$0xff]
        %v230 = vld [vmem:[%s199] sm:$0xff]
        %v231 = vld [vmem:[%s199 + $0x8] sm:$0xff]
        %v232 = vld [vmem:[%s199 + $0x10] sm:$0xff]
        %v233 = vld [vmem:[%s199 + $0x18] sm:$0xff]
        %v234 = vmul.f32 %v226, %v230
        %v235 = vmul.f32 %v227, %v231
        %v236 = vmul.f32 %v228, %v232
        %v237 = vmul.f32 %v229, %v233
        %v238 = vadd.f32 %v234, %v235
        %v239 = vadd.f32 %v238, %v236
        %v240 = vadd.f32 %v239, %v237
        %v241 = vmul.f32 %v226, %v226
        %v242 = vmul.f32 %v227, %v227
        %v243 = vmul.f32 %v228, %v228
        %v244 = vmul.f32 %v229, %v229
        %v245 = vadd.f32 %v241, %v242
        %v246 = vadd.f32 %v245, %v243
        %v247 = vadd.f32 %v246, %v244
        %v248 = vmul.f32 %v230, %v230
        %v249 = vmul.f32 %v231, %v231
        %v250 = vmul.f32 %v232, %v232
        %v251 = vmul.f32 %v233, %v233
        %v252 = vadd.f32 %v248, %v249
        %v253 = vadd.f32 %v252, %v250
        %v254 = vadd.f32 %v253, %v251
        %v255 = vmul.f32 %v247, %v254
        %v256 = vrsqrt.pop %v255
        %v257 = vmul.f32 %v256, %v255
        %v258 = vmul.f32 %v257, %v256
        %v259 = vmul.f32 0.5, %v258
        %v260 = vsub.f32 1.5, %v259
        %v261 = vmul.f32 %v256, %v260
        %v262 = vmul.f32 %v255, %v261
        %vm263 = vcmp.eq.f32.partialorder %v255, inf
        %v264 = vsel %vm263, %v255, %v262
        %vm265 = vcmp.eq.f32.partialorder %v255, 0.0
        %v266 = vand.u32 %v255, 2147483648
        %v267 = vsel %vm265, %v266, %v264
        %v268 = vadd.f32 %v267, 1e-07
        %v269 = vrcp.pop %v268
        %v270 = vmul.f32 %v268, %v269
        %v271 = vsub.f32 1.0, %v270
        %v272 = vmul.f32 %v269, %v271
        %v273 = vadd.f32 %v269, %v272
        %vm274 = vweird.f32 %v268
        %vm275 = vweird.f32 %v269
        %vm276 = vmor %vm274, %vm275
        %v277 = vsel %vm276, %v269, %v273
        %v278 = vand.u32 2147483647, %v268
        %vm279 = vcmp.eq.f32.partialorder %v278, 8.507059e+37
        %v280 = vand.u32 %v268, 2147483648
        %v281 = vor.u32 1.1754944e-38, %v280
        %v282 = vsel %vm279, %v281, %v277
        %v283 = vmul.f32 %v240, %v282
        %v284 = vmax.f32 %v283, -1.0
        %v285 = vmin.f32 %v284, 1.0
        %v286 = vand.u32 2147483647, %v285
        %vm287 = vcmp.lt.f32.partialorder %v286, 0.5
        %vm288 = vcmp.lt.f32.partialorder %v285, 0.0
        %v289 = vmul.f32 %v285, %v285
        %v290 = vadd.f32 %v285, 1.0
        %v291 = vmul.f32 %v290, 0.5
        %v292 = vsub.f32 1.0, %v285
        %v293 = vmul.f32 %v292, 0.5
        %v294 = vsel %vm288, %v291, %v293
        %v295 = vsel %vm287, %v289, %v294
        %v296 = vmul.f32 %v295, -0.008656363
        %v297 = vadd.f32 %v296, -0.042743422
        %v298 = vmul.f32 %v295, %v297
        %v299 = vadd.f32 %v298, 0.16666587
        %v300 = vmul.f32 %v295, %v299
        %v301 = vmul.f32 %v295, -0.70662963
        %v302 = vadd.f32 %v301, 1.0
        %v303 = vrcp.pop %v302
        %v304 = vmul.f32 %v300, %v303
        %v305 = vrsqrt.pop %v295
        %v306 = vmul.f32 %v305, %v295
        %v307 = vmul.f32 %v306, %v305
        %v308 = vmul.f32 0.5, %v307
        %v309 = vsub.f32 1.5, %v308
        %v310 = vmul.f32 %v305, %v309
        %v311 = vmul.f32 %v295, %v310
        %vm312 = vcmp.eq.f32.partialorder %v295, inf
        %v313 = vsel %vm312, %v295, %v311
        %vm314 = vcmp.eq.f32.partialorder %v295, 0.0
        %v315 = vand.u32 %v295, 2147483648
        %v316 = vsel %vm314, %v315, %v313
        %v317 = vmul.f32 %v285, %v304
        %v318 = vsub.f32 7.5497894e-08, %v317
        %v319 = vsub.f32 %v285, %v318
        %v320 = vsub.f32 1.5707963, %v319
        %v321 = vmul.f32 %v316, %v304
        %v322 = vadd.f32 %v316, %v321
        %v323 = vmul.f32 %v322, 2.0
        %v324 = vsub.f32 3.1415927, %v323
        %v325 = vsel %vm288, %v324, %v323
        %v326 = vsel %vm287, %v320, %v325
        %p327 = scmp.eq.s32.totalorder %s27, 0
        // Predicated region
        $region37: #{tpu_custom_call.1} parent=27 // pred_check
          %p328 = pneg %p327
        $region38: #{tpu_custom_call.1} parent=27 // pred_check_branch
          %330 = sbr.rel (%p328) target = $region40
        $region39: #{tpu_custom_call.1} parent=27 // pred_region
          %v331 = vlaneseq
          %v332 = vshrl.u32 %v331, 7
          %v333 = vlaneseq
          %v334 = vand.u32 %v333, 127
          %s335 = smul.u32 %s27, 8
          %v336 = vstv %s335
          %v337 = vadd.s32 %v336, %v332
          %v338 = vmul.u32 %v337, 128
          %v339 = vadd.s32 %v338, %v334
          %vm340 = vcmp.lt.s32.totalorder %v339, 256
          %v341 = vsel %vm340, %v326, 0.0
          %v342 = vadd.f32 %v341, 0.0
          %343 = vst [vmem:[%s225] sm:$0xff] %v342
        $region40: #{tpu_custom_call.1} parent=27 // pred_fallthru
          _
        %p344 = scmp.ne.s32.totalorder %s27, 0
        // Predicated region
        $region41: #{tpu_custom_call.1} parent=27 // pred_check
          %p345 = pneg %p344
        $region42: #{tpu_custom_call.1} parent=27 // pred_check_branch
          %347 = sbr.rel (%p345) target = $region44
        $region43: #{tpu_custom_call.1} parent=27 // pred_region
          %v348 = vadd.f32 %v326, 0.0
          %349 = vst [vmem:[%s225] sm:$0xff] %v348
        $region44: #{tpu_custom_call.1} parent=27 // pred_fallthru
          _
        %s350 = sand.u32 %s100, 1
        %s351 = scalar_lea.sflag [#allocation4], %s350
        %s352 = sand.u32 %s100, 1
        %s353 = smul.addr %s352, 8
        %s354 = scalar_lea.vmem [#allocation7], %s353
        // Predicated region
        $region45: #{tpu_custom_call.1} parent=27 // pred_check
          %p355 = pneg %p110
        $region46: #{tpu_custom_call.1} parent=27 // pred_check_branch
          %357 = sbr.rel (%p355) target = $region48
        $region47: #{tpu_custom_call.1} parent=27 // pred_region
          %359 = vsyncadd %s351, 0
          %s360 = sadd.s32 %s27, %s26
          %s361 = smul.addr %s360, 8
          %s362 = scalar_lea.hbm %s2, %s361
          %s364 = sshll.u32 %s354, 4
          %s365 = int_to_ptr.vmem [resolvable:$true] %s364
          %s366 = sshll.u32 %s362, 4
          %s367 = int_to_ptr.hbm [resolvable:$true] %s366
          %369 = dma.vmem_to_hbm [thread:$0]  %s365, 128, %s367, %s351
        $region48: #{tpu_custom_call.1} parent=27 // pred_fallthru
          _
      $region28: #{tpu_custom_call.1} parent=5 // pred_fallthru
        _
      %p370 = scmp.le.s32.totalorder 2, %s17
      // Predicated region
      $region49: #{tpu_custom_call.1} parent=5 // pred_check
        %p371 = pneg %p370
      $region50: #{tpu_custom_call.1} parent=5 // pred_check_branch
        %373 = sbr.rel (%p371) target = $region52
      $region51: #{tpu_custom_call.1} parent=5 // pred_region
        %s374 = ssub.s32 %s17, 2
        // Predicated region
        $region53: #{tpu_custom_call.1} parent=51 // pred_check
          %p375 = pneg %p116
        $region54: #{tpu_custom_call.1} parent=51 // pred_check_branch
          %377 = sbr.rel (%p375) target = $region56
        $region55: #{tpu_custom_call.1} parent=51 // pred_region
          %s378 = sand.u32 %s101, 1
          %s379 = scalar_lea.sflag [#allocation4], %s378
          %s380 = sand.u32 %s101, 1
          %s381 = smul.addr %s380, 8
          %s382 = scalar_lea.vmem [#allocation7], %s381
          %384 = dma.done %s379, 128
        $region56: #{tpu_custom_call.1} parent=51 // pred_fallthru
          _
      $region52: #{tpu_custom_call.1} parent=5 // pred_fallthru
        _
    $region6: #{tpu_custom_call.1} parent=1 // loop_footer
      %s21 = sadd.s32 1, %s17
    $region7: #{tpu_custom_call.1} parent=1 // loop_footer_branch
      %16 = sbr.rel target = $region3
    $region8: #{tpu_custom_call.1} parent=1 // loop_exit
      _
    %385 = vsyncpa [#allocation3], 1
    %s386 = scalar_lea.sflag [#allocation3], 1
    %387 = vsyncpa %s386, 1
    %388 = vsyncpa [#allocation6], 1
    %s389 = scalar_lea.sflag [#allocation6], 1
    %390 = vsyncpa %s389, 1
    %391 = vsyncpa [#allocation4], 1
    %s392 = scalar_lea.sflag [#allocation4], 1
    %393 = vsyncpa %s392, 1

</llo_original>
